<compile_context>
chip_gen: v6e
topology: v6e:2x2x1
jax: 0.10.0
libtpu: 0.0.40
codegen_flags: <defaults>
</compile_context>

<pallas_src>
import math

import jax
import jax.numpy as jnp
from jax import lax
from jax.experimental import pallas as pl
from jax.experimental.pallas import tpu as pltpu

BN_EPS = 1e-5
LANE = 128
VEC_ROWS = 8          # sublane-padded rows per layer: 0=bias, 1=gamma, 2=beta

# Set to jnp.bfloat16 on v6e / v7x for large shapes (f32 accumulation is kept
# either way).  f32 here so the small test matches the reference to 1e-4.
MATMUL_DTYPE = jnp.float32


def _round_up(n, m):
    return ((n + m - 1) // m) * m


# ---------------------------------------------------------------------------
# Kernel: one grid step == one Linear(+ReLU+BN) layer.
# Refs: x_ref [B, Pmax] f32, vec_ref [VEC_ROWS, Pmax] f32 (this layer),
#       w_ref [Pmax, Pmax] MATMUL_DTYPE (this layer), o_ref [B, Pmax] f32,
#       h_ref [B, Pmax] MATMUL_DTYPE (activation carry, VMEM scratch).
# ---------------------------------------------------------------------------
def make_mlp_kernel(num_layers, batch):
    inv_b = 1.0 / float(batch)

    def kernel(x_ref, vec_ref, w_ref, o_ref, h_ref):
        layer = pl.program_id(0)

        @pl.when(layer == 0)
        def _():
            h_ref[...] = x_ref[...].astype(h_ref.dtype)

        bias = vec_ref[0:1, :]                               # [1, Pmax] f32

        # Linear on the MXU, f32 accumulation. Weights pre-cast in prepare().
        h = jnp.dot(h_ref[...], w_ref[...],
                    preferred_element_type=jnp.float32) + bias

        @pl.when(layer < num_layers - 1)
        def _():
            gamma = vec_ref[1:2, :]                          # [1, Pmax]
            beta = vec_ref[2:3, :]                           # [1, Pmax]

            a = jnp.maximum(h, 0.0)                          # ReLU

            # BatchNorm1d (training mode, biased batch stats), two-pass
            # variance, applied as a single FMA over the [B, Pmax] block.
            mean = jnp.sum(a, axis=0, keepdims=True) * inv_b
            d = a - mean
            var = jnp.sum(d * d, axis=0, keepdims=True) * inv_b
            scale = gamma * lax.rsqrt(var + BN_EPS)          # EUP rsqrt
            shift = beta - mean * scale
            h_ref[...] = (a * scale + shift).astype(h_ref.dtype)

        @pl.when(layer == num_layers - 1)
        def _():
            o_ref[...] = h.astype(o_ref.dtype)

    return kernel


# ---------------------------------------------------------------------------
# One-time parameter preparation (pad, stack, pre-cast).
# ---------------------------------------------------------------------------
def prepare_params(params, matmul_dtype=MATMUL_DTYPE):
    num_layers = len(params)
    dims = [params[0]["w"].shape[0]] + [p["w"].shape[1] for p in params]
    pmax = max(_round_up(d, LANE) for d in dims)

    w_stack = []
    vec_stack = []
    for i, prm in enumerate(params):
        w = prm["w"]
        w_stack.append(
            jnp.pad(w, ((0, pmax - w.shape[0]), (0, pmax - w.shape[1]))))
        rows = jnp.zeros((VEC_ROWS, pmax), jnp.float32)
        rows = rows.at[0, :dims[i + 1]].set(prm["b"].reshape(-1))
        if i != num_layers - 1:
            rows = rows.at[1, :dims[i + 1]].set(prm["gamma"].reshape(-1))
            rows = rows.at[2, :dims[i + 1]].set(prm["beta"].reshape(-1))
        vec_stack.append(rows)

    return {
        "w": jnp.stack(w_stack).astype(matmul_dtype),   # [L, Pmax, Pmax]
        "vecs": jnp.stack(vec_stack),                   # [L, VEC_ROWS, Pmax] f32
        "dims": dims,
        "pmax": pmax,
        "num_layers": num_layers,
        "matmul_dtype": matmul_dtype,
    }


# ---------------------------------------------------------------------------
# Forward call.
# ---------------------------------------------------------------------------
def mlp_forward(x, prep, return_padded=False):
    dims = prep["dims"]
    pmax = prep["pmax"]
    num_layers = prep["num_layers"]
    matmul_dtype = prep["matmul_dtype"]
    batch = x.shape[0]
    itemsize = jnp.dtype(matmul_dtype).itemsize

    # Pad input features to the common lane width (batch axis untouched: BN
    # stats are over the batch axis).
    x_p = jnp.pad(x, ((0, 0), (0, pmax - dims[0])))

    # VMEM budget: resident blocks (+ double-buffered streamed blocks) plus
    # headroom, capped so the value is safe across v5e/v6e (128 MiB) and
    # v7x (64 MiB).
    resident = (batch * pmax * 4                    # x (f32)
                + batch * pmax * 4                  # out (f32)
                + batch * pmax * itemsize           # h scratch
                + 2 * pmax * pmax * itemsize        # double-buffered weight
                + 2 * VEC_ROWS * pmax * 4)          # double-buffered vectors
    vmem_limit = int(min(max(2 * resident + (4 << 20), 16 << 20), 48 << 20))

    flops = 2 * batch * pmax * pmax * num_layers
    transcendentals = pmax * max(num_layers - 1, 0)         # rsqrt per feature
    bytes_accessed = (x_p.size * 4 + prep["vecs"].size * 4
                      + prep["w"].size * itemsize + batch * pmax * 4)

    out_padded = pl.pallas_call(
        make_mlp_kernel(num_layers, batch),
        out_shape=jax.ShapeDtypeStruct((batch, pmax), jnp.float32),
        grid_spec=pltpu.PrefetchScalarGridSpec(
            num_scalar_prefetch=0,
            grid=(num_layers,),
            in_specs=[
                # Input: same block every step -> loaded once, stays resident.
                pl.BlockSpec((batch, pmax), lambda l: (0, 0)),
                # Per-layer packed vectors, streamed per grid step.
                pl.BlockSpec((None, VEC_ROWS, pmax), lambda l: (l, 0, 0)),
                # Per-layer weight block, streamed (double-buffered) per step.
                pl.BlockSpec((None, pmax, pmax), lambda l: (l, 0, 0)),
            ],
            out_specs=pl.BlockSpec((batch, pmax), lambda l: (0, 0)),
            scratch_shapes=[pltpu.VMEM((batch, pmax), matmul_dtype)],
        ),
        compiler_params=pltpu.CompilerParams(
            dimension_semantics=("arbitrary",),      # layers are sequential
            vmem_limit_bytes=vmem_limit,
        ),
        cost_estimate=pl.CostEstimate(flops=int(flops),
                                      transcendentals=int(transcendentals),
                                      bytes_accessed=int(bytes_accessed)),
    )(x_p, prep["vecs"], prep["w"])

    if return_padded:
        return out_padded          # consumer can use lane-padded activations
    return out_padded[:, :dims[-1]]


# ---------------------------------------------------------------------------
# Parameter init (PyTorch Linear defaults) and pure-JAX reference.
# ---------------------------------------------------------------------------
def init_params(key, mlps):
    params = []
    num_layers = len(mlps) - 1
    for i in range(num_layers):
        fan_in, fan_out = mlps[i], mlps[i + 1]
        key, kw, kb = jax.random.split(key, 3)
        bound = 1.0 / math.sqrt(fan_in)
        # Stored pre-transposed: [in, out]  (PyTorch stores [out, in])
        w = jax.random.uniform(kw, (fan_in, fan_out), jnp.float32, -bound, bound)
        b = jax.random.uniform(kb, (1, fan_out), jnp.float32, -bound, bound)
        prm = {"w": w, "b": b}
        if i != num_layers - 1:
            prm["gamma"] = jnp.ones((1, fan_out), jnp.float32)
            prm["beta"] = jnp.zeros((1, fan_out), jnp.float32)
        params.append(prm)
    return params


def reference_forward(x, params):
    """Pure-JAX reference with PyTorch semantics (training-mode BN)."""
    num_layers = len(params)
    h = x
    for i, prm in enumerate(params):
        h = h @ prm["w"] + prm["b"]
        if i != num_layers - 1:
            h = jnp.maximum(h, 0.0)
            mean = jnp.mean(h, axis=0, keepdims=True)
            var = jnp.mean((h - mean) ** 2, axis=0, keepdims=True)
            h = (h - mean) * lax.rsqrt(var + BN_EPS) * prm["gamma"] + prm["beta"]
    return h


if __name__ == "__main__":
    mlps = [32, 64, 48, 16]   # layer widths (the `mlps` ctor arg)
    batch = 8                 # small test batch (multiple of 8, NOT padded)

    key = jax.random.PRNGKey(0)
    key, kx = jax.random.split(key)
    x = jax.random.normal(kx, (batch, mlps[0]), jnp.float32)

    params = init_params(key, mlps)
    prep = prepare_params(params)          # one-time pad/stack/pre-cast

    out = mlp_forward(x, prep)
    out = jax.block_until_ready(out)

    ref = reference_forward(x, params)
    assert out.shape == (batch, mlps[-1])
    assert jnp.allclose(out, ref, atol=1e-4, rtol=1e-4)

    print("KERNEL_OK")
</pallas_src>

<mosaic_0001>
module attributes {stable_mosaic.version = 11 : i64} {
  func.func @kernel(%arg0: i32, %arg1: memref<8x128xf32, #tpu.memory_space<vmem>>, %arg2: memref<1x8x128xf32, #tpu.memory_space<vmem>>, %arg3: memref<1x128x128xf32, #tpu.memory_space<vmem>>, %arg4: memref<8x128xf32, #tpu.memory_space<vmem>>, %arg5: memref<8x128xf32, #tpu.memory_space<vmem>>) attributes {dimension_semantics = [#tpu.dimension_semantics<arbitrary>], iteration_bounds = array<i64: 3>, scalar_prefetch = 0 : i64, scratch_operands = 1 : i64, tpu.core_type = #tpu.core_type<tc>, window_params = [{pipeline_mode = #tpu.pipeline_mode<synchronous>, transform_indices = @transform_0, window_bounds = array<i64: 8, 128>}, {transform_indices = @transform_1, window_bounds = array<i64: 1, 8, 128>}, {transform_indices = @transform_2, window_bounds = array<i64: 1, 128, 128>}, {pipeline_mode = #tpu.pipeline_mode<synchronous>, transform_indices = @transform_3, window_bounds = array<i64: 8, 128>}]} {
    %c0_i32 = arith.constant 0 : i32
    %0 = arith.cmpi eq, %arg0, %c0_i32 : i32
    %1 = arith.extui %0 : i1 to i32
    %c0_i32_0 = arith.constant 0 : i32
    %2 = arith.cmpi ne, %1, %c0_i32_0 : i32
    scf.if %2 {
      %c0_11 = arith.constant 0 : index
      %c0_12 = arith.constant 0 : index
      %17 = vector.load %arg1[%c0_11, %c0_12] : memref<8x128xf32, #tpu.memory_space<vmem>>, vector<8x128xf32>
      %c0_13 = arith.constant 0 : index
      %c0_14 = arith.constant 0 : index
      %18 = vector.load %arg5[%c0_13, %c0_14] : memref<8x128xf32, #tpu.memory_space<vmem>>, vector<8x128xf32>
      tpu.vector_store %arg5[%c0_13, %c0_14], %17 {strides = array<i32>} : memref<8x128xf32, #tpu.memory_space<vmem>>, vector<8x128xf32>,
    } else {
    }
    %c0 = arith.constant 0 : index
    %c0_1 = arith.constant 0 : index
    %c0_2 = arith.constant 0 : index
    %3 = vector.load %arg2[%c0, %c0_1, %c0_2] : memref<1x8x128xf32, #tpu.memory_space<vmem>>, vector<1x1x128xf32>
    %4 = vector.shape_cast %3 : vector<1x1x128xf32> to vector<1x128xf32>
    %c0_3 = arith.constant 0 : index
    %c0_4 = arith.constant 0 : index
    %5 = vector.load %arg5[%c0_3, %c0_4] : memref<8x128xf32, #tpu.memory_space<vmem>>, vector<8x128xf32>
    %c0_5 = arith.constant 0 : index
    %c0_6 = arith.constant 0 : index
    %c0_7 = arith.constant 0 : index
    %6 = vector.load %arg3[%c0_5, %c0_6, %c0_7] : memref<1x128x128xf32, #tpu.memory_space<vmem>>, vector<1x128x128xf32>
    %7 = vector.shape_cast %6 : vector<1x128x128xf32> to vector<128x128xf32>
    %cst = arith.constant dense<0.000000e+00> : vector<8x128xf32>
    %8 = tpu.matmul %5, %7, %cst {dimension_numbers = #tpu.dot_dimension_numbers<[1], [0], [0], [1], [0, 0, 1, 1], [], []>} : vector<8x128xf32>, vector<128x128xf32>, vector<8x128xf32> -> vector<8x128xf32>
    %9 = vector.broadcast %4 : vector<1x128xf32> to vector<8x128xf32>
    %10 = arith.addf %8, %9 : vector<8x128xf32>
    %c2_i32 = arith.constant 2 : i32
    %11 = arith.cmpi slt, %arg0, %c2_i32 : i32
    %12 = arith.extui %11 : i1 to i32
    %c0_i32_8 = arith.constant 0 : i32
    %13 = arith.cmpi ne, %12, %c0_i32_8 : i32
    scf.if %13 {
      %c0_11 = arith.constant 0 : index
      %c1 = arith.constant 1 : index
      %c0_12 = arith.constant 0 : index
      %17 = vector.load %arg2[%c0_11, %c1, %c0_12] : memref<1x8x128xf32, #tpu.memory_space<vmem>>, vector<1x1x128xf32>
      %18 = vector.shape_cast %17 : vector<1x1x128xf32> to vector<1x128xf32>
      %c0_13 = arith.constant 0 : index
      %c2 = arith.constant 2 : index
      %c0_14 = arith.constant 0 : index
      %19 = vector.load %arg2[%c0_13, %c2, %c0_14] : memref<1x8x128xf32, #tpu.memory_space<vmem>>, vector<1x1x128xf32>
      %20 = vector.shape_cast %19 : vector<1x1x128xf32> to vector<1x128xf32>
      %cst_15 = arith.constant 0.000000e+00 : f32
      %21 = vector.broadcast %cst_15 : f32 to vector<8x128xf32>
      %22 = arith.maximumf %10, %21 : vector<8x128xf32>
      %cst_16 = arith.constant dense<0.000000e+00> : vector<128xf32>
      %23 = vector.multi_reduction <add>, %22, %cst_16 [0] : vector<8x128xf32> to vector<128xf32>
      %24 = vector.shape_cast %23 : vector<128xf32> to vector<1x128xf32>
      %cst_17 = arith.constant 1.250000e-01 : f32
      %25 = vector.broadcast %cst_17 : f32 to vector<1x128xf32>
      %26 = arith.mulf %24, %25 : vector<1x128xf32>
      %27 = vector.broadcast %26 : vector<1x128xf32> to vector<8x128xf32>
      %28 = arith.subf %22, %27 : vector<8x128xf32>
      %29 = arith.mulf %28, %28 : vector<8x128xf32>
      %cst_18 = arith.constant dense<0.000000e+00> : vector<128xf32>
      %30 = vector.multi_reduction <add>, %29, %cst_18 [0] : vector<8x128xf32> to vector<128xf32>
      %31 = vector.shape_cast %30 : vector<128xf32> to vector<1x128xf32>
      %cst_19 = arith.constant 1.250000e-01 : f32
      %32 = vector.broadcast %cst_19 : f32 to vector<1x128xf32>
      %33 = arith.mulf %31, %32 : vector<1x128xf32>
      %cst_20 = arith.constant 9.99999974E-6 : f32
      %34 = vector.broadcast %cst_20 : f32 to vector<1x128xf32>
      %35 = arith.addf %33, %34 : vector<1x128xf32>
      %36 = math.rsqrt %35 : vector<1x128xf32>
      %37 = arith.mulf %18, %36 : vector<1x128xf32>
      %38 = arith.mulf %26, %37 : vector<1x128xf32>
      %39 = arith.subf %20, %38 : vector<1x128xf32>
      %40 = vector.broadcast %37 : vector<1x128xf32> to vector<8x128xf32>
      %41 = arith.mulf %22, %40 : vector<8x128xf32>
      %42 = vector.broadcast %39 : vector<1x128xf32> to vector<8x128xf32>
      %43 = arith.addf %41, %42 : vector<8x128xf32>
      %c0_21 = arith.constant 0 : index
      %c0_22 = arith.constant 0 : index
      %44 = vector.load %arg5[%c0_21, %c0_22] : memref<8x128xf32, #tpu.memory_space<vmem>>, vector<8x128xf32>
      tpu.vector_store %arg5[%c0_21, %c0_22], %43 {strides = array<i32>} : memref<8x128xf32, #tpu.memory_space<vmem>>, vector<8x128xf32>,
    } else {
    }
    %c2_i32_9 = arith.constant 2 : i32
    %14 = arith.cmpi eq, %arg0, %c2_i32_9 : i32
    %15 = arith.extui %14 : i1 to i32
    %c0_i32_10 = arith.constant 0 : i32
    %16 = arith.cmpi ne, %15, %c0_i32_10 : i32
    scf.if %16 {
      %c0_11 = arith.constant 0 : index
      %c0_12 = arith.constant 0 : index
      %17 = vector.load %arg4[%c0_11, %c0_12] : memref<8x128xf32, #tpu.memory_space<vmem>>, vector<8x128xf32>
      tpu.vector_store %arg4[%c0_11, %c0_12], %10 {strides = array<i32>} : memref<8x128xf32, #tpu.memory_space<vmem>>, vector<8x128xf32>,
    } else {
    }
    return
  }
  func.func @transform_0(%arg0: i32) -> (i32, i32) {
    %c0_i32 = arith.constant 0 : i32
    %c0_i32_0 = arith.constant 0 : i32
    %c0_i32_1 = arith.constant 0 : i32
    return %c0_i32, %c0_i32_0 : i32, i32
  }
  func.func @transform_1(%arg0: i32) -> (i32, i32, i32) {
    %c0_i32 = arith.constant 0 : i32
    %c0_i32_0 = arith.constant 0 : i32
    %c0_i32_1 = arith.constant 0 : i32
    return %arg0, %c0_i32, %c0_i32_0 : i32, i32, i32
  }
  func.func @transform_2(%arg0: i32) -> (i32, i32, i32) {
    %c0_i32 = arith.constant 0 : i32
    %c0_i32_0 = arith.constant 0 : i32
    %c0_i32_1 = arith.constant 0 : i32
    return %arg0, %c0_i32, %c0_i32_0 : i32, i32, i32
  }
  func.func @transform_3(%arg0: i32) -> (i32, i32) {
    %c0_i32 = arith.constant 0 : i32
    %c0_i32_0 = arith.constant 0 : i32
    %c0_i32_1 = arith.constant 0 : i32
    return %c0_i32, %c0_i32_0 : i32, i32
  }
}

</mosaic_0001>

<llo_original>
// kernel: tpu_custom_call.1
$region0: #{tpu_custom_call.1}
  #allocation0 [shape = 'u32[]', space=smem, size = 0x4, offset = 0x4, fixed_abs, tag = 'smem constant byte address 0x4 - core index']
  #allocation1 [shape = 'u32[144,128]{1,0:T(1,128)}', space=vmem, size = 0x12000, scoped, tag = 'internal scratch']
  #allocation2 [shape = 'f32[8,128]{1,0:T(8,128)}', space=vmem, size = 0x1000, scoped, tag = 'scratch operand']
  %s0 = inlined_call_operand.hbm [shape: f32[8,128], index: 0, kind: input, shape index: {}]
  %s1 = inlined_call_operand.hbm [shape: f32[3,8,128], index: 1, kind: input, shape index: {}]
  %s2 = inlined_call_operand.hbm [shape: f32[3,128,128], index: 2, kind: input, shape index: {}]
  %s3 = inlined_call_operand.hbm [shape: f32[8,128], index: 3, kind: output, shape index: {}]
  %s4 = sld [smem:[#allocation0]]
  $region69: #{tpu_custom_call.1} parent=0
    _
  %s6 = ssub.s32 1, %s4
  %s7 = scalar_select 0, %s6, %s4
  $region1: #{tpu_custom_call.1} parent=0
    #allocation3 [shape = 'u8[4096]{0}', space=vmem, size = 0x1000, scoped, tag = 'input window, operand 0, single buffered']
    #allocation4 [shape = 's32[2]{0}', space=sflag, size = 0x8, scoped, tag = 'scoped memory for tpu_custom_call.1']
    #allocation5 [shape = 's32[2]{0}', space=sflag, size = 0x8, scoped, tag = 'scoped memory for tpu_custom_call.1']
    #allocation6 [shape = 'u8[8192]{0}', space=vmem, size = 0x2000, scoped, tag = 'input window, operand 1']
    #allocation7 [shape = 's32[2]{0}', space=sflag, size = 0x8, scoped, tag = 'scoped memory for tpu_custom_call.1']
    #allocation8 [shape = 'u8[131072]{0}', space=vmem, size = 0x20000, scoped, tag = 'input window, operand 2']
    #allocation9 [shape = 'u8[4096]{0}', space=vmem, size = 0x1000, scoped, tag = 'output window, operand 0, single buffered']
    %8 = vsyncpa [#allocation4], 0
    %9 = vsyncpa [#allocation7], 0
    %s10 = scalar_lea.sflag [#allocation7], 1
    %11 = vsyncpa %s10, 0
    %12 = vsyncpa [#allocation5], 0
    loop: start=0, step=1, limit=5
    $region2: #{tpu_custom_call.1} parent=1 // loop_pre_header
      _
    $region3: #{tpu_custom_call.1} parent=1 // loop_header
      %s14 = sphi 0, %s18
      %p15 = scmp.ge.s32.totalorder %s14, 5
      %s22 = sphi 0, %s22
      %s24 = sphi 0, %s22
      %s25 = sphi 0, %s24
      %s39 = sphi 0, %s25
      %s45 = sphi 0, %s47
      %s48 = sphi 0, %s45
      %s49 = sphi 0, %s48
      %s65 = sphi 0, %s49
      %s71 = sphi 0, %s73
      %s74 = sphi 0, %s71
      %s75 = sphi 0, %s74
      %s91 = sphi 0, %s75
      %s95 = sphi 0, %s95
      %s97 = sphi 0, %s95
      %s98 = sphi 0, %s97
      %s112 = sphi 0, %s98
    $region4: #{tpu_custom_call.1} parent=1 // loop_header_branch
      %17 = sbr.rel (%p15) target = $region8
    $region5: #{tpu_custom_call.1} parent=1 // loop_body
      %s19 = ssub.s32 %s14, 1
      %s20 = ssub.s32 %s14, 2
      %s21 = sadd.s32 %s14, 1
      %s23 = sadd.s32 %s22, 1
      %p26 = scmp.eq.s32.totalorder %s14, 2
      %p27 = scmp.ne.s32.totalorder %s22, %s24
      %p28 = scmp.eq.s32.totalorder %s14, 0
      %p29 = por %p27, %p28
      %p30 = scmp.ne.s32.totalorder %s22, %s24
      %p31 = scmp.eq.s32.totalorder %s19, 2
      %p32 = por %p30, %p31
      %p33 = scmp.ne.s32.totalorder %s24, %s25
      %p34 = scmp.eq.s32.totalorder %s19, 0
      %p35 = por %p33, %p34
      %p36 = scmp.ne.s32.totalorder %s24, %s25
      %p37 = scmp.eq.s32.totalorder %s20, 2
      %p38 = por %p36, %p37
      %p40 = scmp.ne.s32.totalorder %s25, %s39
      %p41 = scmp.eq.s32.totalorder %s20, 0
      %p42 = por %p40, %p41
      %s43 = ssub.s32 %s14, %s21
      %p44 = scmp.eq.s32.totalorder %s43, 0
      %s46 = sadd.s32 %s45, 1
      %s47 = scalar_select %p44, %s45, %s46
      %p50 = pneg %p44
      %p51 = scmp.eq.s32.totalorder %s14, 2
      %p52 = por %p50, %p51
      %p53 = scmp.ne.s32.totalorder %s45, %s48
      %p54 = scmp.eq.s32.totalorder %s14, 0
      %p55 = por %p53, %p54
      %p56 = scmp.ne.s32.totalorder %s45, %s48
      %p57 = scmp.eq.s32.totalorder %s19, 2
      %p58 = por %p56, %p57
      %p59 = scmp.ne.s32.totalorder %s48, %s49
      %p60 = scmp.eq.s32.totalorder %s19, 0
      %p61 = por %p59, %p60
      %p62 = scmp.ne.s32.totalorder %s48, %s49
      %p63 = scmp.eq.s32.totalorder %s20, 2
      %p64 = por %p62, %p63
      %p66 = scmp.ne.s32.totalorder %s49, %s65
      %p67 = scmp.eq.s32.totalorder %s20, 0
      %p68 = por %p66, %p67
      %s69 = ssub.s32 %s14, %s21
      %p70 = scmp.eq.s32.totalorder %s69, 0
      %s72 = sadd.s32 %s71, 1
      %s73 = scalar_select %p70, %s71, %s72
      %p76 = pneg %p70
      %p77 = scmp.eq.s32.totalorder %s14, 2
      %p78 = por %p76, %p77
      %p79 = scmp.ne.s32.totalorder %s71, %s74
      %p80 = scmp.eq.s32.totalorder %s14, 0
      %p81 = por %p79, %p80
      %p82 = scmp.ne.s32.totalorder %s71, %s74
      %p83 = scmp.eq.s32.totalorder %s19, 2
      %p84 = por %p82, %p83
      %p85 = scmp.ne.s32.totalorder %s74, %s75
      %p86 = scmp.eq.s32.totalorder %s19, 0
      %p87 = por %p85, %p86
      %p88 = scmp.ne.s32.totalorder %s74, %s75
      %p89 = scmp.eq.s32.totalorder %s20, 2
      %p90 = por %p88, %p89
      %p92 = scmp.ne.s32.totalorder %s75, %s91
      %p93 = scmp.eq.s32.totalorder %s20, 0
      %p94 = por %p92, %p93
      %s96 = sadd.s32 %s95, 1
      %p99 = scmp.eq.s32.totalorder %s14, 2
      %p100 = scmp.ne.s32.totalorder %s95, %s97
      %p101 = scmp.eq.s32.totalorder %s14, 0
      %p102 = por %p100, %p101
      %p103 = scmp.ne.s32.totalorder %s95, %s97
      %p104 = scmp.eq.s32.totalorder %s19, 2
      %p105 = por %p103, %p104
      %p106 = scmp.ne.s32.totalorder %s97, %s98
      %p107 = scmp.eq.s32.totalorder %s19, 0
      %p108 = por %p106, %p107
      %p109 = scmp.ne.s32.totalorder %s97, %s98
      %p110 = scmp.eq.s32.totalorder %s20, 2
      %p111 = por %p109, %p110
      %p113 = scmp.ne.s32.totalorder %s98, %s112
      %p114 = scmp.eq.s32.totalorder %s20, 0
      %p115 = por %p113, %p114
      %p116 = scmp.le.s32.totalorder 1, %s14
      %p117 = scmp.lt.s32.totalorder %s14, 4
      %p118 = pnand %p116, %p117
      %p119 = pneg %p118
      // Predicated region
      $region9: #{tpu_custom_call.1} parent=5 // pred_check
        _
      $region10: #{tpu_custom_call.1} parent=5 // pred_check_branch
        %121 = sbr.rel (%p118) target = $region12
      $region11: #{tpu_custom_call.1} parent=5 // pred_region
        %s122 = ssub.s32 %s14, 1
        // Predicated region
        $region13: #{tpu_custom_call.1} parent=11 // pred_check
          %p123 = pneg %p35
        $region14: #{tpu_custom_call.1} parent=11 // pred_check_branch
          %125 = sbr.rel (%p123) target = $region16
        $region15: #{tpu_custom_call.1} parent=11 // pred_region
          %s127 = ssub.s32 128, 128
          %128 = vsyncadd [#allocation4], %s127
          %s130 = sshll.u32 [#allocation3], 4
          %s131 = int_to_ptr.vmem [resolvable:$true] %s130
          %133 = dma.hbm_to_vmem [thread:$0]  %s0, 128, %s131, [#allocation4]
        $region16: #{tpu_custom_call.1} parent=11 // pred_fallthru
          _
      $region12: #{tpu_custom_call.1} parent=5 // pred_fallthru
        _
      %p134 = scmp.lt.s32.totalorder %s14, 3
      // Predicated region
      $region17: #{tpu_custom_call.1} parent=5 // pred_check
        %p135 = pneg %p134
      $region18: #{tpu_custom_call.1} parent=5 // pred_check_branch
        %137 = sbr.rel (%p135) target = $region20
      $region19: #{tpu_custom_call.1} parent=5 // pred_region
        // Predicated region
        $region21: #{tpu_custom_call.1} parent=19 // pred_check
          %p138 = pneg %p55
        $region22: #{tpu_custom_call.1} parent=19 // pred_check_branch
          %140 = sbr.rel (%p138) target = $region24
        $region23: #{tpu_custom_call.1} parent=19 // pred_region
          %s141 = sand.u32 %s14, 1
          %s142 = scalar_lea.sflag [#allocation7], %s141
          %s143 = sand.u32 %s45, 1
          %s144 = smul.addr %s143, 8
          %s145 = scalar_lea.vmem [#allocation6], %s144
          %s147 = ssub.s32 128, 128
          %148 = vsyncadd %s142, %s147
          %s149 = smul.addr %s14, 128
          %s150 = scalar_lea.hbm %s1, %s149
          %s152 = sshll.u32 %s145, 4
          %s153 = int_to_ptr.vmem [resolvable:$true] %s152
          %155 = dma.hbm_to_vmem [thread:$0]  %s150, 128, %s153, %s142
        $region24: #{tpu_custom_call.1} parent=19 // pred_fallthru
          _
        // Predicated region
        $region25: #{tpu_custom_call.1} parent=19 // pred_check
          %p156 = pneg %p81
        $region26: #{tpu_custom_call.1} parent=19 // pred_check_branch
          %158 = sbr.rel (%p156) target = $region28
        $region27: #{tpu_custom_call.1} parent=19 // pred_region
          %s159 = sand.u32 %s14, 1
          %s160 = scalar_lea.sflag [#allocation7], %s159
          %s161 = sand.u32 %s71, 1
          %s162 = smul.addr %s161, 128
          %s163 = scalar_lea.vmem [#allocation8], %s162
          %s165 = ssub.s32 2048, 2048
          %166 = vsyncadd %s160, %s165
          %s167 = smul.addr %s14, 16
          %s168 = smul.addr %s167, 128
          %s169 = scalar_lea.hbm %s2, %s168
          %s170 = sshll.u32 %s163, 4
          %s171 = int_to_ptr.vmem [resolvable:$true] %s170
          %176 = dma.hbm_to_vmem [thread:$0]  %s169, 2048, %s171, %s160, 128, 128, 8
        $region28: #{tpu_custom_call.1} parent=19 // pred_fallthru
          _
      $region20: #{tpu_custom_call.1} parent=5 // pred_fallthru
        _
      %p177 = scmp.le.s32.totalorder 1, %s14
      %p178 = scmp.lt.s32.totalorder %s14, 4
      %p179 = pnand %p177, %p178
      %p180 = pneg %p179
      // Predicated region
      $region29: #{tpu_custom_call.1} parent=5 // pred_check
        _
      $region30: #{tpu_custom_call.1} parent=5 // pred_check_branch
        %182 = sbr.rel (%p179) target = $region32
      $region31: #{tpu_custom_call.1} parent=5 // pred_region
        %s183 = ssub.s32 %s14, 1
        // Predicated region
        $region33: #{tpu_custom_call.1} parent=31 // pred_check
          %p184 = pneg %p35
        $region34: #{tpu_custom_call.1} parent=31 // pred_check_branch
          %186 = sbr.rel (%p184) target = $region36
        $region35: #{tpu_custom_call.1} parent=31 // pred_region
          %187 = dma.done [#allocation4], 128
        $region36: #{tpu_custom_call.1} parent=31 // pred_fallthru
          _
        %s188 = sand.u32 %s19, 1
        %s189 = scalar_lea.sflag [#allocation7], %s188
        %s190 = sand.u32 %s48, 1
        %s191 = smul.addr %s190, 8
        %s192 = scalar_lea.vmem [#allocation6], %s191
        // Predicated region
        $region37: #{tpu_custom_call.1} parent=31 // pred_check
          %p193 = pneg %p61
        $region38: #{tpu_custom_call.1} parent=31 // pred_check_branch
          %195 = sbr.rel (%p193) target = $region40
        $region39: #{tpu_custom_call.1} parent=31 // pred_region
          %196 = dma.done %s189, 128
        $region40: #{tpu_custom_call.1} parent=31 // pred_fallthru
          _
        %s197 = sand.u32 %s19, 1
        %s198 = scalar_lea.sflag [#allocation7], %s197
        %s199 = sand.u32 %s74, 1
        %s200 = smul.addr %s199, 128
        %s201 = scalar_lea.vmem [#allocation8], %s200
        // Predicated region
        $region41: #{tpu_custom_call.1} parent=31 // pred_check
          %p202 = pneg %p87
        $region42: #{tpu_custom_call.1} parent=31 // pred_check_branch
          %204 = sbr.rel (%p202) target = $region44
        $region43: #{tpu_custom_call.1} parent=31 // pred_region
          %205 = dma.done %s198, 2048
        $region44: #{tpu_custom_call.1} parent=31 // pred_fallthru
          _
        %p206 = pneg %p35
        %p207 = pneg %p32
        %s208 = sand.u32 %s19, 1
        %s209 = scalar_lea.sflag [#allocation7], %s208
        %s210 = sand.u32 %s48, 1
        %s211 = smul.addr %s210, 8
        %s212 = scalar_lea.vmem [#allocation6], %s211
        %p213 = pneg %p61
        %p214 = pneg %p58
        %s215 = sand.u32 %s19, 1
        %s216 = scalar_lea.sflag [#allocation7], %s215
        %s217 = sand.u32 %s74, 1
        %s218 = smul.addr %s217, 128
        %s219 = scalar_lea.vmem [#allocation8], %s218
        %p220 = pneg %p87
        %p221 = pneg %p84
        %p222 = pneg %p108
        %p223 = pneg %p105
        %p224 = scmp.eq.s32.totalorder %s19, 0
        // Predicated region
        $region45: #{tpu_custom_call.1} parent=31 // pred_check
          %p225 = pneg %p224
        $region46: #{tpu_custom_call.1} parent=31 // pred_check_branch
          %227 = sbr.rel (%p225) target = $region48
        $region47: #{tpu_custom_call.1} parent=31 // pred_region
          %v228 = vld [vmem:[#allocation3] sm:$0xff]
          %229 = vst [vmem:[#allocation2] sm:$0xff] %v228
        $region48: #{tpu_custom_call.1} parent=31 // pred_fallthru
          _
        %v230 = vld [vmem:[%s192] sm:$0x1]
        %v231 = vld [vmem:[#allocation2] sm:$0xff]
        %v232 = vld [vmem:[%s201] sm:$0xff]
        %v233 = vld [vmem:[%s201 + $0x8] sm:$0xff]
        %v234 = vld [vmem:[%s201 + $0x10] sm:$0xff]
        %v235 = vld [vmem:[%s201 + $0x18] sm:$0xff]
        %v236 = vld [vmem:[%s201 + $0x20] sm:$0xff]
        %v237 = vld [vmem:[%s201 + $0x28] sm:$0xff]
        %v238 = vld [vmem:[%s201 + $0x30] sm:$0xff]
        %v239 = vld [vmem:[%s201 + $0x38] sm:$0xff]
        %v240 = vld [vmem:[%s201 + $0x40] sm:$0xff]
        %v241 = vld [vmem:[%s201 + $0x48] sm:$0xff]
        %v242 = vld [vmem:[%s201 + $0x50] sm:$0xff]
        %v243 = vld [vmem:[%s201 + $0x58] sm:$0xff]
        %v244 = vld [vmem:[%s201 + $0x60] sm:$0xff]
        %v245 = vld [vmem:[%s201 + $0x68] sm:$0xff]
        %v246 = vld [vmem:[%s201 + $0x70] sm:$0xff]
        %v247 = vld [vmem:[%s201 + $0x78] sm:$0xff]
        %v248 = vlaneseq
        %v249 = vshrl.u32 %v248, 7
        %v250 = vsub.s32 0, %v249
        %v251 = vrot.slane %v230, %v250
        %252 = vmatprep.subr.mxu0 0.0
        %253 = vmatpush1.msra.mxu0 %v247
        %254 = vmatprep.subr.mxu0 0.0
        %255 = vmatpush1.msra.mxu0 %v246
        %256 = vmatprep.subr.mxu0 0.0
        %257 = vmatpush1.msra.mxu0 %v245
        %258 = vmatprep.subr.mxu0 0.0
        %259 = vmatpush1.msra.mxu0 %v244
        %260 = vmatprep.subr.mxu0 0.0
        %261 = vmatpush1.msra.mxu0 %v243
        %262 = vmatprep.subr.mxu0 0.0
        %263 = vmatpush1.msra.mxu0 %v242
        %264 = vmatprep.subr.mxu0 0.0
        %265 = vmatpush1.msra.mxu0 %v241
        %266 = vmatprep.subr.mxu0 0.0
        %267 = vmatpush1.msra.mxu0 %v240
        %268 = vmatprep.subr.mxu0 0.0
        %269 = vmatpush1.msra.mxu0 %v239
        %270 = vmatprep.subr.mxu0 0.0
        %271 = vmatpush1.msra.mxu0 %v238
        %272 = vmatprep.subr.mxu0 0.0
        %273 = vmatpush1.msra.mxu0 %v237
        %274 = vmatprep.subr.mxu0 0.0
        %275 = vmatpush1.msra.mxu0 %v236
        %276 = vmatprep.subr.mxu0 0.0
        %277 = vmatpush1.msra.mxu0 %v235
        %278 = vmatprep.subr.mxu0 0.0
        %279 = vmatpush1.msra.mxu0 %v234
        %280 = vmatprep.subr.mxu0 0.0
        %281 = vmatpush1.msra.mxu0 %v233
        %282 = vmatprep.subr.mxu0 0.0
        %283 = vmatpush1.msra.mxu0 %v232
        %284 = vmatprep.subr.mxu0 0.0
        %285 = vmatpush2.msra.mxu0 0.0
        %286 = vmatprep.subr.mxu0 0.0
        %287 = vmatpush2.msra.mxu0 0.0
        %288 = vmatprep.subr.mxu0 0.0
        %289 = vmatpush2.msra.mxu0 0.0
        %290 = vmatprep.subr.mxu0 0.0
        %291 = vmatpush2.msra.mxu0 0.0
        %292 = vmatprep.subr.mxu0 0.0
        %293 = vmatpush2.msra.mxu0 0.0
        %294 = vmatprep.subr.mxu0 0.0
        %295 = vmatpush2.msra.mxu0 0.0
        %296 = vmatprep.subr.mxu0 0.0
        %297 = vmatpush2.msra.mxu0 0.0
        %298 = vmatprep.subr.mxu0 0.0
        %299 = vmatpush2.msra.mxu0 0.0
        %300 = vmatprep.subr.mxu0 0.0
        %301 = vmatpush2.msra.mxu0 0.0
        %302 = vmatprep.subr.mxu0 0.0
        %303 = vmatpush2.msra.mxu0 0.0
        %304 = vmatprep.subr.mxu0 0.0
        %305 = vmatpush2.msra.mxu0 0.0
        %306 = vmatprep.subr.mxu0 0.0
        %307 = vmatpush2.msra.mxu0 0.0
        %308 = vmatprep.subr.mxu0 0.0
        %309 = vmatpush2.msra.mxu0 0.0
        %310 = vmatprep.subr.mxu0 0.0
        %311 = vmatpush2.msra.mxu0 0.0
        %312 = vmatprep.subr.mxu0 0.0
        %313 = vmatpush2.msra.mxu0 0.0
        %314 = vmatprep.subr.mxu0 0.0
        %315 = vmatpush2.msra.mxu0 0.0
        %316 = vmatprep.mubr.f32.mxu0 0.0
        %317 = vmatmul.mubr.f32.gmra.mxu0 %v231
        %v318 = vpop.f32.mrf.mxu0
        %v319 = vadd.f32 %v251, %v318
        %v320 = vpop.f32.mrf.mxu0
        %321 = vdwg.mxu0
        %p322 = scmp.lt.s32.totalorder %s19, 2
        // Predicated region
        $region49: #{tpu_custom_call.1} parent=31 // pred_check
          %p323 = pneg %p322
        $region50: #{tpu_custom_call.1} parent=31 // pred_check_branch
          %325 = sbr.rel (%p323) target = $region52
        $region51: #{tpu_custom_call.1} parent=31 // pred_region
          %v326 = vld [vmem:[%s192 + $0x1] sm:$0x1]
          %v327 = vld [vmem:[%s192 + $0x2] sm:$0x1]
          %v328 = vmax.f32 %v319, 0.0
          %v329 = vrot.slane %v328, 4
          %v330 = vadd.f32 %v328, %v329
          %v331 = vrot.slane %v330, 2
          %v332 = vadd.f32 %v330, %v331
          %v333 = vrot.slane %v332, 1
          %v334 = vadd.f32 %v332, %v333
          %v335 = vmul.f32 %v334, 0.125
          %v336 = vsub.f32 %v328, %v335
          %v337 = vmul.f32 %v336, %v336
          %v338 = vrot.slane %v337, 4
          %v339 = vadd.f32 %v337, %v338
          %v340 = vrot.slane %v339, 2
          %v341 = vadd.f32 %v339, %v340
          %v342 = vrot.slane %v341, 1
          %v343 = vadd.f32 %v341, %v342
          %v344 = vmul.f32 %v343, 0.125
          %v345 = vadd.f32 %v344, 1e-05
          %v346 = vrsqrt.pop %v345
          %v347 = vmul.f32 %v326, %v346
          %v348 = vmul.f32 %v335, %v347
          %v349 = vsub.f32 %v327, %v348
          %v350 = vlaneseq
          %v351 = vshrl.u32 %v350, 7
          %v352 = vsub.s32 0, %v351
          %v353 = vrot.slane %v347, %v352
          %v354 = vmul.f32 %v328, %v353
          %v355 = vlaneseq
          %v356 = vshrl.u32 %v355, 7
          %v357 = vsub.s32 0, %v356
          %v358 = vrot.slane %v349, %v357
          %v359 = vadd.f32 %v354, %v358
          %360 = vst [vmem:[#allocation2] sm:$0xff] %v359
        $region52: #{tpu_custom_call.1} parent=31 // pred_fallthru
          _
        %p361 = scmp.eq.s32.totalorder %s19, 2
        // Predicated region
        $region53: #{tpu_custom_call.1} parent=31 // pred_check
          %p362 = pneg %p361
        $region54: #{tpu_custom_call.1} parent=31 // pred_check_branch
          %364 = sbr.rel (%p362) target = $region56
        $region55: #{tpu_custom_call.1} parent=31 // pred_region
          %365 = vst [vmem:[#allocation9] sm:$0xff] %v319
        $region56: #{tpu_custom_call.1} parent=31 // pred_fallthru
          _
        // Predicated region
        $region57: #{tpu_custom_call.1} parent=31 // pred_check
          %p366 = pneg %p105
        $region58: #{tpu_custom_call.1} parent=31 // pred_check_branch
          %368 = sbr.rel (%p366) target = $region60
        $region59: #{tpu_custom_call.1} parent=31 // pred_region
          %s370 = ssub.s32 128, 128
          %371 = vsyncadd [#allocation5], %s370
          %s373 = sshll.u32 [#allocation9], 4
          %s374 = int_to_ptr.vmem [resolvable:$true] %s373
          %376 = dma.vmem_to_hbm [thread:$0]  %s374, 128, %s3, [#allocation5]
        $region60: #{tpu_custom_call.1} parent=31 // pred_fallthru
          _
        // Predicated region
        $region61: #{tpu_custom_call.1} parent=31 // pred_check
          %p377 = pneg %p105
        $region62: #{tpu_custom_call.1} parent=31 // pred_check_branch
          %379 = sbr.rel (%p377) target = $region64
        $region63: #{tpu_custom_call.1} parent=31 // pred_region
          %380 = dma.done [#allocation5], 128
        $region64: #{tpu_custom_call.1} parent=31 // pred_fallthru
          _
      $region32: #{tpu_custom_call.1} parent=5 // pred_fallthru
        _
      %p381 = scmp.le.s32.totalorder 2, %s14
      // Predicated region
      $region65: #{tpu_custom_call.1} parent=5 // pred_check
        %p382 = pneg %p381
      $region66: #{tpu_custom_call.1} parent=5 // pred_check_branch
        %384 = sbr.rel (%p382) target = $region68
      $region67: #{tpu_custom_call.1} parent=5 // pred_region
        %s385 = ssub.s32 %s14, 2
      $region68: #{tpu_custom_call.1} parent=5 // pred_fallthru
        _
    $region6: #{tpu_custom_call.1} parent=1 // loop_footer
      %s18 = sadd.s32 1, %s14
    $region7: #{tpu_custom_call.1} parent=1 // loop_footer_branch
      %13 = sbr.rel target = $region3
    $region8: #{tpu_custom_call.1} parent=1 // loop_exit
      _
    %386 = vsyncpa [#allocation4], 1
    %s387 = scalar_lea.sflag [#allocation4], 1
    %388 = vsyncpa %s387, 1
    %389 = vsyncpa [#allocation7], 1
    %s390 = scalar_lea.sflag [#allocation7], 1
    %391 = vsyncpa %s390, 1
    %392 = vsyncpa [#allocation5], 1
    %s393 = scalar_lea.sflag [#allocation5], 1
    %394 = vsyncpa %s393, 1

</llo_original>
